<compile_context>
chip_gen: v7x
topology: tpu7x:2x2x1
jax: 0.10.0
libtpu: 0.0.40
codegen_flags: <defaults>
</compile_context>

<pallas_src>
import math

import jax
import jax.numpy as jnp
from jax.experimental import pallas as pl
from jax.experimental.pallas import tpu as pltpu

_INV_SQRT2 = 1.0 / math.sqrt(2.0)


def _round_up(v, m):
    return (v + m - 1) // m * m


def _cdiv(a, b):
    return -(-a // b)


def _make_mlp_kernel(tile_h, acc_in_out, approximate_gelu):
    def kernel(x_ref, w1_ref, b1_ref, w2_ref, b2_ref, o_ref, *scratch):
        acc_ref = o_ref if acc_in_out else scratch[0]
        hk = pl.program_id(1)                      # hidden-dim (reduction) axis, innermost

        @pl.when(hk == 0)
        def _init():
            acc_ref[...] = jnp.zeros_like(acc_ref)

        x = x_ref[...]                             # [TM, D_in_p]
        # b1 is fully resident; slice the current H-chunk (start is a multiple of 128).
        b1 = b1_ref[:, pl.ds(pl.multiple_of(hk * tile_h, 128), tile_h)]
        # fc1 chunk: x @ W1[:, hk] + b1[hk]
        h = jnp.dot(x, w1_ref[...], preferred_element_type=jnp.float32) + b1.astype(jnp.float32)
        # GELU (exact erf by default -- matches nn.GELU default semantics)
        if approximate_gelu:
            h = jax.nn.gelu(h, approximate=True)
        else:
            h = 0.5 * h * (1.0 + jax.lax.erf(h * _INV_SQRT2))
        # drop1 (p=0.0) and norm (Identity) are no-ops.
        # fc2 partial: accumulate h_chunk @ W2[hk, :] in f32
        acc_ref[...] += jnp.dot(h.astype(w2_ref.dtype), w2_ref[...],
                                preferred_element_type=jnp.float32)

        @pl.when(hk == pl.num_programs(1) - 1)
        def _finalize():
            # drop2 (p=0.0) is a no-op.
            if acc_in_out:
                o_ref[...] += b2_ref[...].astype(o_ref.dtype)
            else:
                o_ref[...] = (acc_ref[...] + b2_ref[...].astype(jnp.float32)).astype(o_ref.dtype)

    return kernel


def _vmem_need(tm, th, D_in_p, H_p, D_out_p, in_isz, out_isz, acc_in_out):
    need = (2 * tm * D_in_p * in_isz          # x tile (double buffered)
            + 2 * D_in_p * th * in_isz        # W1 H-chunk
            + 2 * H_p * 4                     # b1 (resident; f32 worst case)
            + 2 * th * D_out_p * in_isz       # W2 H-chunk
            + 2 * D_out_p * 4                 # b2
            + 2 * tm * D_out_p * out_isz)     # out tile
    if not acc_in_out:
        need += tm * D_out_p * 4              # f32 accumulator scratch
    return need


def _select_tiles(N, D_in_p, H_p, D_out_p, in_isz, out_isz, acc_in_out, vmem_budget):
    """Pick (tile_m, tile_h) maximizing tile_m*tile_h under the VMEM budget."""
    sublane = max(8, 32 // in_isz)            # 8 f32 / 16 bf16 / 32 int8-fp8

    def choose_tm(tm_max):
        N_s = _round_up(N, sublane)
        tm = min(tm_max, N_s)
        # Guarantee >= 2 row tiles when rows allow it, so the "parallel" axis can
        # shard across v7x's two TensorCores (and pipeline on v5e/v6e).
        if N_s >= 2 * sublane and N_s <= tm:
            tm = _round_up(_cdiv(N_s, 2), sublane)
        return tm

    best = None
    for tm_max in (2048, 1024, 512, 256, 128, 64, 32, 16, 8):
        if tm_max < sublane:
            continue
        tm = choose_tm(tm_max)
        for th_cand in (2048, 1024, 512, 256, 128):
            th = min(th_cand, H_p)
            if _vmem_need(tm, th, D_in_p, H_p, D_out_p, in_isz, out_isz, acc_in_out) > vmem_budget:
                continue
            score = (tm * th, tm, th)
            if best is None or score > best[0]:
                best = (score, tm, th)
    if best is None:
        # Minimal tiles; vmem_limit is raised to cover it below.
        # TODO(synk): tile D_in/D_out as well for extreme feature dims that still don't fit.
        return choose_tm(sublane), 128
    return best[1], best[2]


def mlp_pallas(x, w1, b1, w2, b2, *, compute_dtype=None, approximate_gelu=False):
    """x: [N, D_in]; w1: [D_in, H]; b1: [H]; w2: [H, D_out]; b2: [D_out]."""
    N, D_in = x.shape
    H = w1.shape[1]
    D_out = w2.shape[1]

    lane = 128
    D_in_p = _round_up(D_in, lane)
    H_p = _round_up(H, lane)
    D_out_p = _round_up(D_out, lane)

    out_dtype = x.dtype
    in_dtype = jnp.dtype(compute_dtype) if compute_dtype is not None else jnp.dtype(x.dtype)
    in_isz = in_dtype.itemsize
    out_isz = jnp.dtype(out_dtype).itemsize
    # f32 outputs: accumulate directly into the (k-resident) output block, no scratch.
    acc_in_out = jnp.dtype(out_dtype) == jnp.dtype(jnp.float32)

    # Generation-aware VMEM budget (v5e/v6e: 128 MiB physical; v7x: 64 MiB per TC).
    try:
        vmem_cap = int(pltpu.get_tpu_info().vmem_capacity_bytes)
    except Exception:
        vmem_cap = 64 << 20                   # conservative fallback
    vmem_budget = max(vmem_cap - (16 << 20), vmem_cap // 2)

    tile_m, tile_h_max = _select_tiles(N, D_in_p, H_p, D_out_p, in_isz, out_isz,
                                       acc_in_out, vmem_budget)

    # Even-split H into n_h chunks of width tile_h (multiple of 128) -> minimal padding.
    n_h = _cdiv(H_p, tile_h_max)
    tile_h = _round_up(_cdiv(H_p, n_h), lane)
    H_pp = tile_h * n_h

    N_p = _round_up(N, tile_m)
    grid = (N_p // tile_m, n_h)               # reduction axis last

    # Zero-pad operands (zeros contribute nothing; GELU(0)=0 in padded hidden cols).
    xp = jnp.pad(x, ((0, N_p - N), (0, D_in_p - D_in)))
    w1p = jnp.pad(w1, ((0, D_in_p - D_in), (0, H_pp - H)))
    b1p = jnp.pad(b1, (0, H_pp - H)).reshape(1, H_pp)
    w2p = jnp.pad(w2, ((0, H_pp - H), (0, D_out_p - D_out)))
    b2p = jnp.pad(b2, (0, D_out_p - D_out)).reshape(1, D_out_p)
    if compute_dtype is not None:
        xp = xp.astype(in_dtype)
        w1p = w1p.astype(in_dtype)
        w2p = w2p.astype(in_dtype)            # biases stay in original precision (f32 accumulate)

    # Always set the scoped VMEM limit (fixes v5e's 16 MiB default), capped below physical.
    need = _vmem_need(tile_m, tile_h, D_in_p, H_pp, D_out_p, in_isz, out_isz, acc_in_out)
    vmem_limit = int(min(max(need + (4 << 20), 32 << 20), vmem_cap - (4 << 20)))

    b1_isz = jnp.dtype(b1p.dtype).itemsize
    b2_isz = jnp.dtype(b2p.dtype).itemsize
    cost = pl.CostEstimate(
        flops=2 * N_p * (D_in_p * H_pp + H_pp * D_out_p),
        transcendentals=N_p * H_pp,
        bytes_accessed=int(
            N_p * D_in_p * in_isz                                   # x: once per row tile
            + (D_in_p * H_pp + H_pp * D_out_p) * in_isz * grid[0]   # W1/W2: re-fetched per row tile
            + H_pp * b1_isz + D_out_p * b2_isz                      # biases: resident
            + N_p * D_out_p * out_isz),                             # output: written once
    )

    kernel = _make_mlp_kernel(tile_h, acc_in_out, approximate_gelu)
    scratch_shapes = [] if acc_in_out else [pltpu.VMEM((tile_m, D_out_p), jnp.float32)]

    out_p = pl.pallas_call(
        kernel,
        out_shape=jax.ShapeDtypeStruct((N_p, D_out_p), out_dtype),
        grid_spec=pltpu.PrefetchScalarGridSpec(
            num_scalar_prefetch=0,
            grid=grid,
            in_specs=[
                pl.BlockSpec((tile_m, D_in_p),  lambda i, k: (i, 0)),   # x row tile
                pl.BlockSpec((D_in_p, tile_h),  lambda i, k: (0, k)),   # W1 H-chunk (streams)
                pl.BlockSpec((1, H_pp),         lambda i, k: (0, 0)),   # b1 fully resident
                pl.BlockSpec((tile_h, D_out_p), lambda i, k: (k, 0)),   # W2 H-chunk (streams)
                pl.BlockSpec((1, D_out_p),      lambda i, k: (0, 0)),   # b2 resident
            ],
            out_specs=pl.BlockSpec((tile_m, D_out_p), lambda i, k: (i, 0)),
            scratch_shapes=scratch_shapes,
        ),
        compiler_params=pltpu.CompilerParams(
            dimension_semantics=("parallel", "arbitrary"),
            vmem_limit_bytes=vmem_limit,
        ),
        cost_estimate=cost,
    )(xp, w1p, b1p, w2p, b2p)

    return out_p[:N, :D_out]


def mlp_reference(x, w1, b1, w2, b2):
    h = x @ w1 + b1
    h = jax.nn.gelu(h, approximate=False)
    return h @ w2 + b2


if __name__ == "__main__":
    # Module config: in_features=32, hidden_features=64, out_features=32
    B, S = 2, 8
    D_in, H, D_out = 32, 64, 32

    key = jax.random.PRNGKey(0)
    kx, kw1, kb1, kw2, kb2 = jax.random.split(key, 5)

    x = jax.random.normal(kx, (B, S, D_in), dtype=jnp.float32)

    # Deterministic PyTorch-Linear-style init (kaiming-uniform-ish bounds)
    lim1 = 1.0 / math.sqrt(D_in)
    lim2 = 1.0 / math.sqrt(H)
    w1 = jax.random.uniform(kw1, (D_in, H), jnp.float32, -lim1, lim1)
    b1 = jax.random.uniform(kb1, (H,), jnp.float32, -lim1, lim1)
    w2 = jax.random.uniform(kw2, (H, D_out), jnp.float32, -lim2, lim2)
    b2 = jax.random.uniform(kb2, (D_out,), jnp.float32, -lim2, lim2)

    # Flatten leading dims (PyTorch Linear acts on the last axis)
    x2d = x.reshape(B * S, D_in)

    out2d = mlp_pallas(x2d, w1, b1, w2, b2)
    out = out2d.reshape(B, S, D_out)
    jax.block_until_ready(out)

    ref = mlp_reference(x2d, w1, b1, w2, b2).reshape(B, S, D_out)
    assert out.shape == (B, S, D_out)
    assert jnp.allclose(out, ref, atol=1e-5, rtol=1e-5), "mismatch vs reference"

    print("KERNEL_OK")
</pallas_src>

<mosaic_0001>
module attributes {stable_mosaic.version = 11 : i64} {
  func.func @kernel(%arg0: i32, %arg1: i32, %arg2: memref<8x128xf32, #tpu.memory_space<vmem>>, %arg3: memref<128x128xf32, #tpu.memory_space<vmem>>, %arg4: memref<1x128xf32, #tpu.memory_space<vmem>>, %arg5: memref<128x128xf32, #tpu.memory_space<vmem>>, %arg6: memref<1x128xf32, #tpu.memory_space<vmem>>, %arg7: memref<8x128xf32, #tpu.memory_space<vmem>>) attributes {dimension_semantics = [#tpu.dimension_semantics<parallel>, #tpu.dimension_semantics<arbitrary>], iteration_bounds = array<i64: 2, 1>, scalar_prefetch = 0 : i64, scratch_operands = 0 : i64, tpu.core_type = #tpu.core_type<tc>, window_params = [{transform_indices = @transform_0, window_bounds = array<i64: 8, 128>}, {transform_indices = @transform_1, window_bounds = array<i64: 128, 128>}, {pipeline_mode = #tpu.pipeline_mode<synchronous>, transform_indices = @transform_2, window_bounds = array<i64: 1, 128>}, {transform_indices = @transform_3, window_bounds = array<i64: 128, 128>}, {pipeline_mode = #tpu.pipeline_mode<synchronous>, transform_indices = @transform_4, window_bounds = array<i64: 1, 128>}, {transform_indices = @transform_5, window_bounds = array<i64: 8, 128>}]} {
    %c0_i32 = arith.constant 0 : i32
    %0 = arith.cmpi eq, %arg1, %c0_i32 : i32
    %1 = arith.extui %0 : i1 to i32
    %c0_i32_0 = arith.constant 0 : i32
    %2 = arith.cmpi ne, %1, %c0_i32_0 : i32
    scf.if %2 {
      %cst_17 = arith.constant 0.000000e+00 : f32
      %28 = vector.broadcast %cst_17 : f32 to vector<8x128xf32>
      %c0_18 = arith.constant 0 : index
      %c0_19 = arith.constant 0 : index
      %29 = vector.load %arg7[%c0_18, %c0_19] : memref<8x128xf32, #tpu.memory_space<vmem>>, vector<8x128xf32>
      tpu.vector_store %arg7[%c0_18, %c0_19], %28 {strides = array<i32>} : memref<8x128xf32, #tpu.memory_space<vmem>>, vector<8x128xf32>,
    } else {
    }
    %c0 = arith.constant 0 : index
    %c0_1 = arith.constant 0 : index
    %3 = vector.load %arg2[%c0, %c0_1] : memref<8x128xf32, #tpu.memory_space<vmem>>, vector<8x128xf32>
    %c128_i32 = arith.constant 128 : i32
    %4 = arith.muli %arg1, %c128_i32 : i32
    %5 = tpu.assume_multiple %4, 128 : i32
    %c0_2 = arith.constant 0 : index
    %6 = arith.index_cast %5 : i32 to index
    %7 = vector.load %arg4[%c0_2, %6] : memref<1x128xf32, #tpu.memory_space<vmem>>, vector<1x128xf32>
    %c0_3 = arith.constant 0 : index
    %c0_4 = arith.constant 0 : index
    %8 = vector.load %arg3[%c0_3, %c0_4] : memref<128x128xf32, #tpu.memory_space<vmem>>, vector<128x128xf32>
    %cst = arith.constant dense<0.000000e+00> : vector<8x128xf32>
    %9 = tpu.matmul %3, %8, %cst {dimension_numbers = #tpu.dot_dimension_numbers<[1], [0], [0], [1], [0, 0, 1, 1], [], []>} : vector<8x128xf32>, vector<128x128xf32>, vector<8x128xf32> -> vector<8x128xf32>
    %10 = vector.broadcast %7 : vector<1x128xf32> to vector<8x128xf32>
    %11 = arith.addf %9, %10 : vector<8x128xf32>
    %cst_5 = arith.constant 5.000000e-01 : f32
    %12 = vector.broadcast %cst_5 : f32 to vector<8x128xf32>
    %13 = arith.mulf %12, %11 : vector<8x128xf32>
    %cst_6 = arith.constant 0.707106769 : f32
    %14 = vector.broadcast %cst_6 : f32 to vector<8x128xf32>
    %15 = arith.mulf %11, %14 : vector<8x128xf32>
    %16 = math.erf %15 : vector<8x128xf32>
    %cst_7 = arith.constant 1.000000e+00 : f32
    %17 = vector.broadcast %cst_7 : f32 to vector<8x128xf32>
    %18 = arith.addf %17, %16 : vector<8x128xf32>
    %19 = arith.mulf %13, %18 : vector<8x128xf32>
    %c0_8 = arith.constant 0 : index
    %c0_9 = arith.constant 0 : index
    %20 = vector.load %arg7[%c0_8, %c0_9] : memref<8x128xf32, #tpu.memory_space<vmem>>, vector<8x128xf32>
    %c0_10 = arith.constant 0 : index
    %c0_11 = arith.constant 0 : index
    %21 = vector.load %arg5[%c0_10, %c0_11] : memref<128x128xf32, #tpu.memory_space<vmem>>, vector<128x128xf32>
    %cst_12 = arith.constant dense<0.000000e+00> : vector<8x128xf32>
    %22 = tpu.matmul %19, %21, %cst_12 {dimension_numbers = #tpu.dot_dimension_numbers<[1], [0], [0], [1], [0, 0, 1, 1], [], []>} : vector<8x128xf32>, vector<128x128xf32>, vector<8x128xf32> -> vector<8x128xf32>
    %23 = arith.addf %20, %22 : vector<8x128xf32>
    %c0_13 = arith.constant 0 : index
    %c0_14 = arith.constant 0 : index
    %24 = vector.load %arg7[%c0_13, %c0_14] : memref<8x128xf32, #tpu.memory_space<vmem>>, vector<8x128xf32>
    tpu.vector_store %arg7[%c0_13, %c0_14], %23 {strides = array<i32>} : memref<8x128xf32, #tpu.memory_space<vmem>>, vector<8x128xf32>,
    %c0_i32_15 = arith.constant 0 : i32
    %25 = arith.cmpi eq, %arg1, %c0_i32_15 : i32
    %26 = arith.extui %25 : i1 to i32
    %c0_i32_16 = arith.constant 0 : i32
    %27 = arith.cmpi ne, %26, %c0_i32_16 : i32
    scf.if %27 {
      %c0_17 = arith.constant 0 : index
      %c0_18 = arith.constant 0 : index
      %28 = vector.load %arg7[%c0_17, %c0_18] : memref<8x128xf32, #tpu.memory_space<vmem>>, vector<8x128xf32>
      %c0_19 = arith.constant 0 : index
      %c0_20 = arith.constant 0 : index
      %29 = vector.load %arg6[%c0_19, %c0_20] : memref<1x128xf32, #tpu.memory_space<vmem>>, vector<1x128xf32>
      %30 = vector.broadcast %29 : vector<1x128xf32> to vector<8x128xf32>
      %31 = arith.addf %28, %30 : vector<8x128xf32>
      %c0_21 = arith.constant 0 : index
      %c0_22 = arith.constant 0 : index
      %32 = vector.load %arg7[%c0_21, %c0_22] : memref<8x128xf32, #tpu.memory_space<vmem>>, vector<8x128xf32>
      tpu.vector_store %arg7[%c0_21, %c0_22], %31 {strides = array<i32>} : memref<8x128xf32, #tpu.memory_space<vmem>>, vector<8x128xf32>,
    } else {
    }
    return
  }
  func.func @transform_0(%arg0: i32, %arg1: i32) -> (i32, i32) {
    %c0_i32 = arith.constant 0 : i32
    %c0_i32_0 = arith.constant 0 : i32
    return %arg0, %c0_i32 : i32, i32
  }
  func.func @transform_1(%arg0: i32, %arg1: i32) -> (i32, i32) {
    %c0_i32 = arith.constant 0 : i32
    %c0_i32_0 = arith.constant 0 : i32
    return %c0_i32, %arg1 : i32, i32
  }
  func.func @transform_2(%arg0: i32, %arg1: i32) -> (i32, i32) {
    %c0_i32 = arith.constant 0 : i32
    %c0_i32_0 = arith.constant 0 : i32
    %c0_i32_1 = arith.constant 0 : i32
    return %c0_i32, %c0_i32_0 : i32, i32
  }
  func.func @transform_3(%arg0: i32, %arg1: i32) -> (i32, i32) {
    %c0_i32 = arith.constant 0 : i32
    %c0_i32_0 = arith.constant 0 : i32
    return %arg1, %c0_i32 : i32, i32
  }
  func.func @transform_4(%arg0: i32, %arg1: i32) -> (i32, i32) {
    %c0_i32 = arith.constant 0 : i32
    %c0_i32_0 = arith.constant 0 : i32
    %c0_i32_1 = arith.constant 0 : i32
    return %c0_i32, %c0_i32_0 : i32, i32
  }
  func.func @transform_5(%arg0: i32, %arg1: i32) -> (i32, i32) {
    %c0_i32 = arith.constant 0 : i32
    %c0_i32_0 = arith.constant 0 : i32
    return %arg0, %c0_i32 : i32, i32
  }
}

</mosaic_0001>

<llo_original>
// kernel: tpu_custom_call.1
$region0: #{tpu_custom_call.1}
  #allocation0 [shape = 'u32[]', space=smem, size = 0x4, offset = 0x4, fixed_abs, tag = 'smem constant byte address 0x4 - core index']
  #allocation1 [shape = 'u32[144,128]{1,0:T(1,128)}', space=vmem, size = 0x12000, scoped, tag = 'internal scratch']
  %s0 = inlined_call_operand.hbm [shape: f32[16,128], index: 0, kind: input, shape index: {}]
  %s1 = inlined_call_operand.hbm [shape: f32[128,128], index: 1, kind: input, shape index: {}]
  %s2 = inlined_call_operand.vmem [shape: f32[1,128], index: 2, kind: input, shape index: {}]
  %s3 = inlined_call_operand.hbm [shape: f32[128,128], index: 3, kind: input, shape index: {}]
  %s4 = inlined_call_operand.vmem [shape: f32[1,128], index: 4, kind: input, shape index: {}]
  %s5 = inlined_call_operand.hbm [shape: f32[16,128], index: 5, kind: output, shape index: {}]
  %s6 = sld [smem:[#allocation0]]
  $region73: #{tpu_custom_call.1} parent=0
    _
  %s8 = ssub.s32 1, %s6
  %s9 = scalar_select 0, %s8, %s6
  $region1: #{tpu_custom_call.1} parent=0
    #allocation2 [shape = 'u8[8192]{0}', space=vmem, size = 0x2000, scoped, tag = 'input window, operand 0']
    #allocation3 [shape = 's32[2]{0}', space=sflag, size = 0x8, scoped, tag = 'scoped memory for tpu_custom_call.1']
    #allocation4 [shape = 's32[2]{0}', space=sflag, size = 0x8, scoped, tag = 'scoped memory for tpu_custom_call.1']
    #allocation5 [shape = 'u8[65536]{0}', space=vmem, size = 0x10000, scoped, tag = 'input window, operand 1, single buffered']
    #allocation6 [shape = 's32[1]{0}', space=sflag, size = 0x4, scoped, tag = 'scoped memory for tpu_custom_call.1']
    #allocation7 [shape = 'u8[65536]{0}', space=vmem, size = 0x10000, scoped, tag = 'input window, operand 3, single buffered']
    #allocation8 [shape = 'u8[8192]{0}', space=vmem, size = 0x2000, scoped, tag = 'output window, operand 0']
    %10 = vsyncpa [#allocation3], 0
    %s11 = scalar_lea.sflag [#allocation3], 1
    %12 = vsyncpa %s11, 0
    %13 = vsyncpa [#allocation6], 0
    %14 = vsyncpa [#allocation4], 0
    %s15 = scalar_lea.sflag [#allocation4], 1
    %16 = vsyncpa %s15, 0
    loop: start=0, step=1, limit=4
    $region2: #{tpu_custom_call.1} parent=1 // loop_pre_header
      _
    $region3: #{tpu_custom_call.1} parent=1 // loop_header
      %s18 = sphi 0, %s22
      %p19 = scmp.ge.s32.totalorder %s18, 4
      %s25 = sphi 0, %s37
      %s26 = sphi 0, %s33
      %s27 = sphi 0, %s25
      %s28 = sphi 0, %s26
      %s29 = sphi 0, %s27
      %s30 = sphi 0, %s28
      %s40 = sphi 0, %s42
      %s43 = sphi 0, %s40
      %s44 = sphi 0, %s43
      %s60 = sphi 0, %s44
      %s66 = sphi 0, %s68
      %s69 = sphi 0, %s66
      %s70 = sphi 0, %s69
      %s86 = sphi 0, %s70
      %s90 = sphi 0, %s90
      %s92 = sphi 0, %s90
      %s93 = sphi 0, %s92
      %s107 = sphi 0, %s93
      %s113 = sphi 0, %s115
      %s116 = sphi 0, %s113
      %s117 = sphi 0, %s116
      %s133 = sphi 0, %s117
      %s137 = sphi 0, %s137
      %s139 = sphi 0, %s137
      %s140 = sphi 0, %s139
      %s154 = sphi 0, %s140
      %s160 = sphi 0, %s162
      %s163 = sphi 0, %s160
      %s164 = sphi 0, %s163
      %s180 = sphi 0, %s164
    $region4: #{tpu_custom_call.1} parent=1 // loop_header_branch
      %21 = sbr.rel (%p19) target = $region8
    $region5: #{tpu_custom_call.1} parent=1 // loop_body
      %s23 = ssub.s32 %s18, 1
      %s24 = ssub.s32 %s18, 2
      %s31 = sadd.s32 1, %s26
      %p32 = scmp.ge.s32.totalorder %s31, 1
      %s33 = scalar_select %p32, 0, %s31
      %s34 = sadd.s32 1, %s25
      %s35 = scalar_select %p32, %s34, %s25
      %p36 = scmp.ge.s32.totalorder %s35, 2
      %s37 = scalar_select %p36, 0, %s35
      %s38 = ssub.s32 %s25, %s37
      %p39 = scmp.eq.s32.totalorder %s38, 0
      %s41 = sadd.s32 %s40, 1
      %s42 = scalar_select %p39, %s40, %s41
      %p45 = pneg %p39
      %p46 = scmp.eq.s32.totalorder %s18, 1
      %p47 = por %p45, %p46
      %p48 = scmp.ne.s32.totalorder %s40, %s43
      %p49 = scmp.eq.s32.totalorder %s18, 0
      %p50 = por %p48, %p49
      %p51 = scmp.ne.s32.totalorder %s40, %s43
      %p52 = scmp.eq.s32.totalorder %s23, 1
      %p53 = por %p51, %p52
      %p54 = scmp.ne.s32.totalorder %s43, %s44
      %p55 = scmp.eq.s32.totalorder %s23, 0
      %p56 = por %p54, %p55
      %p57 = scmp.ne.s32.totalorder %s43, %s44
      %p58 = scmp.eq.s32.totalorder %s24, 1
      %p59 = por %p57, %p58
      %p61 = scmp.ne.s32.totalorder %s44, %s60
      %p62 = scmp.eq.s32.totalorder %s24, 0
      %p63 = por %p61, %p62
      %s64 = ssub.s32 %s26, %s33
      %p65 = scmp.eq.s32.totalorder %s64, 0
      %s67 = sadd.s32 %s66, 1
      %s68 = scalar_select %p65, %s66, %s67
      %p71 = pneg %p65
      %p72 = scmp.eq.s32.totalorder %s18, 1
      %p73 = por %p71, %p72
      %p74 = scmp.ne.s32.totalorder %s66, %s69
      %p75 = scmp.eq.s32.totalorder %s18, 0
      %p76 = por %p74, %p75
      %p77 = scmp.ne.s32.totalorder %s66, %s69
      %p78 = scmp.eq.s32.totalorder %s23, 1
      %p79 = por %p77, %p78
      %p80 = scmp.ne.s32.totalorder %s69, %s70
      %p81 = scmp.eq.s32.totalorder %s23, 0
      %p82 = por %p80, %p81
      %p83 = scmp.ne.s32.totalorder %s69, %s70
      %p84 = scmp.eq.s32.totalorder %s24, 1
      %p85 = por %p83, %p84
      %p87 = scmp.ne.s32.totalorder %s70, %s86
      %p88 = scmp.eq.s32.totalorder %s24, 0
      %p89 = por %p87, %p88
      %s91 = sadd.s32 %s90, 1
      %p94 = scmp.eq.s32.totalorder %s18, 1
      %p95 = scmp.ne.s32.totalorder %s90, %s92
      %p96 = scmp.eq.s32.totalorder %s18, 0
      %p97 = por %p95, %p96
      %p98 = scmp.ne.s32.totalorder %s90, %s92
      %p99 = scmp.eq.s32.totalorder %s23, 1
      %p100 = por %p98, %p99
      %p101 = scmp.ne.s32.totalorder %s92, %s93
      %p102 = scmp.eq.s32.totalorder %s23, 0
      %p103 = por %p101, %p102
      %p104 = scmp.ne.s32.totalorder %s92, %s93
      %p105 = scmp.eq.s32.totalorder %s24, 1
      %p106 = por %p104, %p105
      %p108 = scmp.ne.s32.totalorder %s93, %s107
      %p109 = scmp.eq.s32.totalorder %s24, 0
      %p110 = por %p108, %p109
      %s111 = ssub.s32 %s26, %s33
      %p112 = scmp.eq.s32.totalorder %s111, 0
      %s114 = sadd.s32 %s113, 1
      %s115 = scalar_select %p112, %s113, %s114
      %p118 = pneg %p112
      %p119 = scmp.eq.s32.totalorder %s18, 1
      %p120 = por %p118, %p119
      %p121 = scmp.ne.s32.totalorder %s113, %s116
      %p122 = scmp.eq.s32.totalorder %s18, 0
      %p123 = por %p121, %p122
      %p124 = scmp.ne.s32.totalorder %s113, %s116
      %p125 = scmp.eq.s32.totalorder %s23, 1
      %p126 = por %p124, %p125
      %p127 = scmp.ne.s32.totalorder %s116, %s117
      %p128 = scmp.eq.s32.totalorder %s23, 0
      %p129 = por %p127, %p128
      %p130 = scmp.ne.s32.totalorder %s116, %s117
      %p131 = scmp.eq.s32.totalorder %s24, 1
      %p132 = por %p130, %p131
      %p134 = scmp.ne.s32.totalorder %s117, %s133
      %p135 = scmp.eq.s32.totalorder %s24, 0
      %p136 = por %p134, %p135
      %s138 = sadd.s32 %s137, 1
      %p141 = scmp.eq.s32.totalorder %s18, 1
      %p142 = scmp.ne.s32.totalorder %s137, %s139
      %p143 = scmp.eq.s32.totalorder %s18, 0
      %p144 = por %p142, %p143
      %p145 = scmp.ne.s32.totalorder %s137, %s139
      %p146 = scmp.eq.s32.totalorder %s23, 1
      %p147 = por %p145, %p146
      %p148 = scmp.ne.s32.totalorder %s139, %s140
      %p149 = scmp.eq.s32.totalorder %s23, 0
      %p150 = por %p148, %p149
      %p151 = scmp.ne.s32.totalorder %s139, %s140
      %p152 = scmp.eq.s32.totalorder %s24, 1
      %p153 = por %p151, %p152
      %p155 = scmp.ne.s32.totalorder %s140, %s154
      %p156 = scmp.eq.s32.totalorder %s24, 0
      %p157 = por %p155, %p156
      %s158 = ssub.s32 %s25, %s37
      %p159 = scmp.eq.s32.totalorder %s158, 0
      %s161 = sadd.s32 %s160, 1
      %s162 = scalar_select %p159, %s160, %s161
      %p165 = pneg %p159
      %p166 = scmp.eq.s32.totalorder %s18, 1
      %p167 = por %p165, %p166
      %p168 = scmp.ne.s32.totalorder %s160, %s163
      %p169 = scmp.eq.s32.totalorder %s18, 0
      %p170 = por %p168, %p169
      %p171 = scmp.ne.s32.totalorder %s160, %s163
      %p172 = scmp.eq.s32.totalorder %s23, 1
      %p173 = por %p171, %p172
      %p174 = scmp.ne.s32.totalorder %s163, %s164
      %p175 = scmp.eq.s32.totalorder %s23, 0
      %p176 = por %p174, %p175
      %p177 = scmp.ne.s32.totalorder %s163, %s164
      %p178 = scmp.eq.s32.totalorder %s24, 1
      %p179 = por %p177, %p178
      %p181 = scmp.ne.s32.totalorder %s164, %s180
      %p182 = scmp.eq.s32.totalorder %s24, 0
      %p183 = por %p181, %p182
      %p184 = scmp.le.s32.totalorder 1, %s18
      %p185 = scmp.lt.s32.totalorder %s18, 3
      %p186 = pnand %p184, %p185
      %p187 = pneg %p186
      // Predicated region
      $region9: #{tpu_custom_call.1} parent=5 // pred_check
        _
      $region10: #{tpu_custom_call.1} parent=5 // pred_check_branch
        %189 = sbr.rel (%p186) target = $region12
      $region11: #{tpu_custom_call.1} parent=5 // pred_region
        %s190 = ssub.s32 %s18, 1
        // Predicated region
        $region13: #{tpu_custom_call.1} parent=11 // pred_check
          %p191 = pneg %p82
        $region14: #{tpu_custom_call.1} parent=11 // pred_check_branch
          %193 = sbr.rel (%p191) target = $region16
        $region15: #{tpu_custom_call.1} parent=11 // pred_region
          %s195 = ssub.s32 2048, 2048
          %196 = vsyncadd [#allocation6], %s195
          %s197 = smul.addr %s28, 128
          %s198 = scalar_lea.hbm %s1, %s197
          %s199 = sshll.u32 [#allocation5], 4
          %s200 = int_to_ptr.vmem [resolvable:$true] %s199
          %205 = dma.hbm_to_vmem [thread:$0]  %s198, 2048, %s200, [#allocation6], 128, 128, 8
        $region16: #{tpu_custom_call.1} parent=11 // pred_fallthru
          _
        // Predicated region
        $region17: #{tpu_custom_call.1} parent=11 // pred_check
          %p206 = pneg %p103
        $region18: #{tpu_custom_call.1} parent=11 // pred_check_branch
          %208 = sbr.rel (%p206) target = $region20
        $region19: #{tpu_custom_call.1} parent=11 // pred_region
          _
        $region20: #{tpu_custom_call.1} parent=11 // pred_fallthru
          _
        // Predicated region
        $region21: #{tpu_custom_call.1} parent=11 // pred_check
          %p209 = pneg %p129
        $region22: #{tpu_custom_call.1} parent=11 // pred_check_branch
          %211 = sbr.rel (%p209) target = $region24
        $region23: #{tpu_custom_call.1} parent=11 // pred_region
          %s212 = smul.u32 16, %s28
          %s214 = ssub.s32 2048, 2048
          %215 = vsyncadd [#allocation6], %s214
          %s216 = smul.addr %s212, 128
          %s217 = scalar_lea.hbm %s3, %s216
          %s218 = sshll.u32 [#allocation7], 4
          %s219 = int_to_ptr.vmem [resolvable:$true] %s218
          %224 = dma.hbm_to_vmem [thread:$0]  %s217, 2048, %s219, [#allocation6], 128, 128, 8
        $region24: #{tpu_custom_call.1} parent=11 // pred_fallthru
          _
        // Predicated region
        $region25: #{tpu_custom_call.1} parent=11 // pred_check
          %p225 = pneg %p150
        $region26: #{tpu_custom_call.1} parent=11 // pred_check_branch
          %227 = sbr.rel (%p225) target = $region28
        $region27: #{tpu_custom_call.1} parent=11 // pred_region
          _
        $region28: #{tpu_custom_call.1} parent=11 // pred_fallthru
          _
      $region12: #{tpu_custom_call.1} parent=5 // pred_fallthru
        _
      %p228 = scmp.lt.s32.totalorder %s18, 2
      // Predicated region
      $region29: #{tpu_custom_call.1} parent=5 // pred_check
        %p229 = pneg %p228
      $region30: #{tpu_custom_call.1} parent=5 // pred_check_branch
        %231 = sbr.rel (%p229) target = $region32
      $region31: #{tpu_custom_call.1} parent=5 // pred_region
        // Predicated region
        $region33: #{tpu_custom_call.1} parent=31 // pred_check
          %p232 = pneg %p50
        $region34: #{tpu_custom_call.1} parent=31 // pred_check_branch
          %234 = sbr.rel (%p232) target = $region36
        $region35: #{tpu_custom_call.1} parent=31 // pred_region
          %s235 = sand.u32 %s40, 1
          %s236 = scalar_lea.sflag [#allocation3], %s235
          %s237 = sand.u32 %s40, 1
          %s238 = smul.addr %s237, 8
          %s239 = scalar_lea.vmem [#allocation2], %s238
          %s241 = ssub.s32 128, 128
          %242 = vsyncadd %s236, %s241
          %s243 = smul.addr %s25, 128
          %s244 = scalar_lea.hbm %s0, %s243
          %s246 = sshll.u32 %s239, 4
          %s247 = int_to_ptr.vmem [resolvable:$true] %s246
          %249 = dma.hbm_to_vmem [thread:$0]  %s244, 128, %s247, %s236
        $region36: #{tpu_custom_call.1} parent=31 // pred_fallthru
          _
      $region32: #{tpu_custom_call.1} parent=5 // pred_fallthru
        _
      %p250 = scmp.le.s32.totalorder 1, %s18
      %p251 = scmp.lt.s32.totalorder %s18, 3
      %p252 = pnand %p250, %p251
      %p253 = pneg %p252
      // Predicated region
      $region37: #{tpu_custom_call.1} parent=5 // pred_check
        _
      $region38: #{tpu_custom_call.1} parent=5 // pred_check_branch
        %255 = sbr.rel (%p252) target = $region40
      $region39: #{tpu_custom_call.1} parent=5 // pred_region
        %s256 = ssub.s32 %s18, 1
        %s257 = sand.u32 %s43, 1
        %s258 = scalar_lea.sflag [#allocation3], %s257
        %s259 = sand.u32 %s43, 1
        %s260 = smul.addr %s259, 8
        %s261 = scalar_lea.vmem [#allocation2], %s260
        // Predicated region
        $region41: #{tpu_custom_call.1} parent=39 // pred_check
          %p262 = pneg %p56
        $region42: #{tpu_custom_call.1} parent=39 // pred_check_branch
          %264 = sbr.rel (%p262) target = $region44
        $region43: #{tpu_custom_call.1} parent=39 // pred_region
          %265 = dma.done %s258, 128
        $region44: #{tpu_custom_call.1} parent=39 // pred_fallthru
          _
        // Predicated region
        $region45: #{tpu_custom_call.1} parent=39 // pred_check
          %p266 = pneg %p82
        $region46: #{tpu_custom_call.1} parent=39 // pred_check_branch
          %268 = sbr.rel (%p266) target = $region48
        $region47: #{tpu_custom_call.1} parent=39 // pred_region
          %269 = dma.done [#allocation6], 2048
        $region48: #{tpu_custom_call.1} parent=39 // pred_fallthru
          _
        // Predicated region
        $region49: #{tpu_custom_call.1} parent=39 // pred_check
          %p270 = pneg %p129
        $region50: #{tpu_custom_call.1} parent=39 // pred_check_branch
          %272 = sbr.rel (%p270) target = $region52
        $region51: #{tpu_custom_call.1} parent=39 // pred_region
          %273 = dma.done [#allocation6], 2048
        $region52: #{tpu_custom_call.1} parent=39 // pred_fallthru
          _
        %s274 = sand.u32 %s43, 1
        %s275 = scalar_lea.sflag [#allocation3], %s274
        %s276 = sand.u32 %s43, 1
        %s277 = smul.addr %s276, 8
        %s278 = scalar_lea.vmem [#allocation2], %s277
        %p279 = pneg %p56
        %p280 = pneg %p53
        %p281 = pneg %p82
        %p282 = pneg %p79
        %p283 = pneg %p103
        %p284 = pneg %p100
        %p285 = pneg %p129
        %p286 = pneg %p126
        %p287 = pneg %p150
        %p288 = pneg %p147
        %p289 = pneg %p176
        %p290 = pneg %p173
        %s291 = sand.u32 %s163, 1
        %s292 = scalar_lea.sflag [#allocation4], %s291
        %s293 = sand.u32 %s163, 1
        %s294 = smul.addr %s293, 8
        %s295 = scalar_lea.vmem [#allocation8], %s294
        %s296 = smul.u32 16, %s28
        %p297 = scmp.eq.s32.totalorder %s28, 0
        // Predicated region
        $region53: #{tpu_custom_call.1} parent=39 // pred_check
          %p298 = pneg %p297
        $region54: #{tpu_custom_call.1} parent=39 // pred_check_branch
          %300 = sbr.rel (%p298) target = $region56
        $region55: #{tpu_custom_call.1} parent=39 // pred_region
          %301 = vst [vmem:[%s295] sm:$0xff] 0.0
        $region56: #{tpu_custom_call.1} parent=39 // pred_fallthru
          _
        %v302 = vld [vmem:[%s261] sm:$0xff]
        %s303 = smul.u32 %s28, 128
        %s304 = sshra.s32 %s303, 7
        %s305 = sand.u32 %s303, 127
        %s306 = scalar_lea.vmem %s2, %s304
        %v307 = vld [vmem:[%s306] sm:$0x1]
        %v308 = vld [vmem:[#allocation5] sm:$0xff]
        %v309 = vld [vmem:[#allocation5 + $0x8] sm:$0xff]
        %v310 = vld [vmem:[#allocation5 + $0x10] sm:$0xff]
        %v311 = vld [vmem:[#allocation5 + $0x18] sm:$0xff]
        %v312 = vld [vmem:[#allocation5 + $0x20] sm:$0xff]
        %v313 = vld [vmem:[#allocation5 + $0x28] sm:$0xff]
        %v314 = vld [vmem:[#allocation5 + $0x30] sm:$0xff]
        %v315 = vld [vmem:[#allocation5 + $0x38] sm:$0xff]
        %v316 = vld [vmem:[#allocation5 + $0x40] sm:$0xff]
        %v317 = vld [vmem:[#allocation5 + $0x48] sm:$0xff]
        %v318 = vld [vmem:[#allocation5 + $0x50] sm:$0xff]
        %v319 = vld [vmem:[#allocation5 + $0x58] sm:$0xff]
        %v320 = vld [vmem:[#allocation5 + $0x60] sm:$0xff]
        %v321 = vld [vmem:[#allocation5 + $0x68] sm:$0xff]
        %v322 = vld [vmem:[#allocation5 + $0x70] sm:$0xff]
        %v323 = vld [vmem:[#allocation5 + $0x78] sm:$0xff]
        %v325 = vlaneseq
        %v326 = vshrl.u32 %v325, 7
        %v327 = vsub.s32 0, %v326
        %v328 = vrot.slane %v307, %v327
        %330 = vmatprep.subr.mxu0 0.0
        %331 = vmatpush1.msra.mxu0 %v308
        %332 = vmatprep.subr.mxu0 0.0
        %333 = vmatpush1.msra.mxu0 %v309
        %334 = vmatprep.subr.mxu0 0.0
        %335 = vmatpush1.msra.mxu0 %v310
        %336 = vmatprep.subr.mxu0 0.0
        %337 = vmatpush1.msra.mxu0 %v311
        %338 = vmatprep.subr.mxu0 0.0
        %339 = vmatpush1.msra.mxu0 %v312
        %340 = vmatprep.subr.mxu0 0.0
        %341 = vmatpush1.msra.mxu0 %v313
        %342 = vmatprep.subr.mxu0 0.0
        %343 = vmatpush1.msra.mxu0 %v314
        %344 = vmatprep.subr.mxu0 0.0
        %345 = vmatpush1.msra.mxu0 %v315
        %346 = vmatprep.subr.mxu0 0.0
        %347 = vmatpush1.msra.mxu0 %v316
        %348 = vmatprep.subr.mxu0 0.0
        %349 = vmatpush1.msra.mxu0 %v317
        %350 = vmatprep.subr.mxu0 0.0
        %351 = vmatpush1.msra.mxu0 %v318
        %352 = vmatprep.subr.mxu0 0.0
        %353 = vmatpush1.msra.mxu0 %v319
        %354 = vmatprep.subr.mxu0 0.0
        %355 = vmatpush1.msra.mxu0 %v320
        %356 = vmatprep.subr.mxu0 0.0
        %357 = vmatpush1.msra.mxu0 %v321
        %358 = vmatprep.subr.mxu0 0.0
        %359 = vmatpush1.msra.mxu0 %v322
        %360 = vmatprep.subr.mxu0 0.0
        %361 = vmatpush1.msra.mxu0 %v323
        %362 = vmatprep.subr.mxu0 0.0
        %363 = vmatpush1.msra.mxu0 0.0
        %364 = vmatprep.subr.mxu0 0.0
        %365 = vmatpush1.msra.mxu0 0.0
        %366 = vmatprep.subr.mxu0 0.0
        %367 = vmatpush1.msra.mxu0 0.0
        %368 = vmatprep.subr.mxu0 0.0
        %369 = vmatpush1.msra.mxu0 0.0
        %370 = vmatprep.subr.mxu0 0.0
        %371 = vmatpush1.msra.mxu0 0.0
        %372 = vmatprep.subr.mxu0 0.0
        %373 = vmatpush1.msra.mxu0 0.0
        %374 = vmatprep.subr.mxu0 0.0
        %375 = vmatpush1.msra.mxu0 0.0
        %376 = vmatprep.subr.mxu0 0.0
        %377 = vmatpush1.msra.mxu0 0.0
        %378 = vmatprep.subr.mxu0 0.0
        %379 = vmatpush1.msra.mxu0 0.0
        %380 = vmatprep.subr.mxu0 0.0
        %381 = vmatpush1.msra.mxu0 0.0
        %382 = vmatprep.subr.mxu0 0.0
        %383 = vmatpush1.msra.mxu0 0.0
        %384 = vmatprep.subr.mxu0 0.0
        %385 = vmatpush1.msra.mxu0 0.0
        %386 = vmatprep.subr.mxu0 0.0
        %387 = vmatpush1.msra.mxu0 0.0
        %388 = vmatprep.subr.mxu0 0.0
        %389 = vmatpush1.msra.mxu0 0.0
        %390 = vmatprep.subr.mxu0 0.0
        %391 = vmatpush1.msra.mxu0 0.0
        %392 = vmatprep.subr.mxu0 0.0
        %393 = vmatpush1.msra.mxu0 0.0
        %394 = vmatprep.mubr.f32.mxu0 0.0
        %395 = vmatmul.mubr.f32.gmra.mrb[0].mxu0 %v302
        %v396 = vpop.f32.mrb[0].mxu0
        %v397 = vadd.f32 %v328, %v396
        %v398 = vpop.f32.mrb[0].mxu0
        %399 = vdwg.mxu0
        %v400 = vmul.f32 %v397, 0.5
        %v401 = vmul.f32 %v397, 0.70710677
        %v402 = verf.f32.pop %v401
        %v403 = vadd.f32 %v402, 1.0
        %v404 = vmul.f32 %v400, %v403
        %v405 = vld [vmem:[%s295] sm:$0xff]
        %v406 = vld [vmem:[#allocation7] sm:$0xff]
        %v407 = vld [vmem:[#allocation7 + $0x8] sm:$0xff]
        %v408 = vld [vmem:[#allocation7 + $0x10] sm:$0xff]
        %v409 = vld [vmem:[#allocation7 + $0x18] sm:$0xff]
        %v410 = vld [vmem:[#allocation7 + $0x20] sm:$0xff]
        %v411 = vld [vmem:[#allocation7 + $0x28] sm:$0xff]
        %v412 = vld [vmem:[#allocation7 + $0x30] sm:$0xff]
        %v413 = vld [vmem:[#allocation7 + $0x38] sm:$0xff]
        %v414 = vld [vmem:[#allocation7 + $0x40] sm:$0xff]
        %v415 = vld [vmem:[#allocation7 + $0x48] sm:$0xff]
        %v416 = vld [vmem:[#allocation7 + $0x50] sm:$0xff]
        %v417 = vld [vmem:[#allocation7 + $0x58] sm:$0xff]
        %v418 = vld [vmem:[#allocation7 + $0x60] sm:$0xff]
        %v419 = vld [vmem:[#allocation7 + $0x68] sm:$0xff]
        %v420 = vld [vmem:[#allocation7 + $0x70] sm:$0xff]
        %v421 = vld [vmem:[#allocation7 + $0x78] sm:$0xff]
        %422 = vmatprep.subr.mxu0 0.0
        %423 = vmatpush1.msra.mxu0 %v406
        %424 = vmatprep.subr.mxu0 0.0
        %425 = vmatpush1.msra.mxu0 %v407
        %426 = vmatprep.subr.mxu0 0.0
        %427 = vmatpush1.msra.mxu0 %v408
        %428 = vmatprep.subr.mxu0 0.0
        %429 = vmatpush1.msra.mxu0 %v409
        %430 = vmatprep.subr.mxu0 0.0
        %431 = vmatpush1.msra.mxu0 %v410
        %432 = vmatprep.subr.mxu0 0.0
        %433 = vmatpush1.msra.mxu0 %v411
        %434 = vmatprep.subr.mxu0 0.0
        %435 = vmatpush1.msra.mxu0 %v412
        %436 = vmatprep.subr.mxu0 0.0
        %437 = vmatpush1.msra.mxu0 %v413
        %438 = vmatprep.subr.mxu0 0.0
        %439 = vmatpush1.msra.mxu0 %v414
        %440 = vmatprep.subr.mxu0 0.0
        %441 = vmatpush1.msra.mxu0 %v415
        %442 = vmatprep.subr.mxu0 0.0
        %443 = vmatpush1.msra.mxu0 %v416
        %444 = vmatprep.subr.mxu0 0.0
        %445 = vmatpush1.msra.mxu0 %v417
        %446 = vmatprep.subr.mxu0 0.0
        %447 = vmatpush1.msra.mxu0 %v418
        %448 = vmatprep.subr.mxu0 0.0
        %449 = vmatpush1.msra.mxu0 %v419
        %450 = vmatprep.subr.mxu0 0.0
        %451 = vmatpush1.msra.mxu0 %v420
        %452 = vmatprep.subr.mxu0 0.0
        %453 = vmatpush1.msra.mxu0 %v421
        %454 = vmatprep.subr.mxu0 0.0
        %455 = vmatpush1.msra.mxu0 0.0
        %456 = vmatprep.subr.mxu0 0.0
        %457 = vmatpush1.msra.mxu0 0.0
        %458 = vmatprep.subr.mxu0 0.0
        %459 = vmatpush1.msra.mxu0 0.0
        %460 = vmatprep.subr.mxu0 0.0
        %461 = vmatpush1.msra.mxu0 0.0
        %462 = vmatprep.subr.mxu0 0.0
        %463 = vmatpush1.msra.mxu0 0.0
        %464 = vmatprep.subr.mxu0 0.0
        %465 = vmatpush1.msra.mxu0 0.0
        %466 = vmatprep.subr.mxu0 0.0
        %467 = vmatpush1.msra.mxu0 0.0
        %468 = vmatprep.subr.mxu0 0.0
        %469 = vmatpush1.msra.mxu0 0.0
        %470 = vmatprep.subr.mxu0 0.0
        %471 = vmatpush1.msra.mxu0 0.0
        %472 = vmatprep.subr.mxu0 0.0
        %473 = vmatpush1.msra.mxu0 0.0
        %474 = vmatprep.subr.mxu0 0.0
        %475 = vmatpush1.msra.mxu0 0.0
        %476 = vmatprep.subr.mxu0 0.0
        %477 = vmatpush1.msra.mxu0 0.0
        %478 = vmatprep.subr.mxu0 0.0
        %479 = vmatpush1.msra.mxu0 0.0
        %480 = vmatprep.subr.mxu0 0.0
        %481 = vmatpush1.msra.mxu0 0.0
        %482 = vmatprep.subr.mxu0 0.0
        %483 = vmatpush1.msra.mxu0 0.0
        %484 = vmatprep.subr.mxu0 0.0
        %485 = vmatpush1.msra.mxu0 0.0
        %486 = vmatprep.mubr.f32.mxu0 0.0
        %487 = vmatmul.mubr.f32.gmra.mrb[0].mxu0 %v404
        %v488 = vpop.f32.mrb[0].mxu0
        %v489 = vadd.f32 0.0, %v488
        %v490 = vpop.f32.mrb[0].mxu0
        %491 = vdwg.mxu0
        %v492 = vadd.f32 %v405, %v489
        %493 = vst [vmem:[%s295] sm:$0xff] %v492
        // Predicated region
        $region57: #{tpu_custom_call.1} parent=39 // pred_check
          %p494 = pneg %p297
        $region58: #{tpu_custom_call.1} parent=39 // pred_check_branch
          %496 = sbr.rel (%p494) target = $region60
        $region59: #{tpu_custom_call.1} parent=39 // pred_region
          %v497 = vld [vmem:[%s295] sm:$0xff]
          %v498 = vld [vmem:[%s4] sm:$0x1]
          %v500 = vlaneseq
          %v501 = vshrl.u32 %v500, 7
          %v502 = vsub.s32 0, %v501
          %v503 = vrot.slane %v498, %v502
          %v505 = vadd.f32 %v497, %v503
          %506 = vst [vmem:[%s295] sm:$0xff] %v505
        $region60: #{tpu_custom_call.1} parent=39 // pred_fallthru
          _
        %s507 = sand.u32 %s163, 1
        %s508 = scalar_lea.sflag [#allocation4], %s507
        %s509 = sand.u32 %s163, 1
        %s510 = smul.addr %s509, 8
        %s511 = scalar_lea.vmem [#allocation8], %s510
        // Predicated region
        $region61: #{tpu_custom_call.1} parent=39 // pred_check
          %p512 = pneg %p173
        $region62: #{tpu_custom_call.1} parent=39 // pred_check_branch
          %514 = sbr.rel (%p512) target = $region64
        $region63: #{tpu_custom_call.1} parent=39 // pred_region
          %s516 = ssub.s32 128, 128
          %517 = vsyncadd %s508, %s516
          %s518 = smul.addr %s27, 128
          %s519 = scalar_lea.hbm %s5, %s518
          %s521 = sshll.u32 %s511, 4
          %s522 = int_to_ptr.vmem [resolvable:$true] %s521
          %524 = dma.vmem_to_hbm [thread:$0]  %s522, 128, %s519, %s508
        $region64: #{tpu_custom_call.1} parent=39 // pred_fallthru
          _
      $region40: #{tpu_custom_call.1} parent=5 // pred_fallthru
        _
      %p525 = scmp.le.s32.totalorder 2, %s18
      // Predicated region
      $region65: #{tpu_custom_call.1} parent=5 // pred_check
        %p526 = pneg %p525
      $region66: #{tpu_custom_call.1} parent=5 // pred_check_branch
        %528 = sbr.rel (%p526) target = $region68
      $region67: #{tpu_custom_call.1} parent=5 // pred_region
        %s529 = ssub.s32 %s18, 2
        // Predicated region
        $region69: #{tpu_custom_call.1} parent=67 // pred_check
          %p530 = pneg %p179
        $region70: #{tpu_custom_call.1} parent=67 // pred_check_branch
          %532 = sbr.rel (%p530) target = $region72
        $region71: #{tpu_custom_call.1} parent=67 // pred_region
          %s533 = sand.u32 %s164, 1
          %s534 = scalar_lea.sflag [#allocation4], %s533
          %s535 = sand.u32 %s164, 1
          %s536 = smul.addr %s535, 8
          %s537 = scalar_lea.vmem [#allocation8], %s536
          %538 = dma.done %s534, 128
        $region72: #{tpu_custom_call.1} parent=67 // pred_fallthru
          _
      $region68: #{tpu_custom_call.1} parent=5 // pred_fallthru
        _
    $region6: #{tpu_custom_call.1} parent=1 // loop_footer
      %s22 = sadd.s32 1, %s18
    $region7: #{tpu_custom_call.1} parent=1 // loop_footer_branch
      %17 = sbr.rel target = $region3
    $region8: #{tpu_custom_call.1} parent=1 // loop_exit
      _
    %539 = vsyncpa [#allocation3], 1
    %s540 = scalar_lea.sflag [#allocation3], 1
    %541 = vsyncpa %s540, 1
    %542 = vsyncpa [#allocation6], 1
    %543 = vsyncpa [#allocation4], 1
    %s544 = scalar_lea.sflag [#allocation4], 1
    %545 = vsyncpa %s544, 1

</llo_original>
